<compile_context>
chip_gen: v6e
topology: v6e:2x2x1
jax: 0.10.0
libtpu: 0.0.40
codegen_flags: <defaults>
</compile_context>

<pallas_src>
import functools

import jax
import jax.numpy as jnp
from jax.experimental import pallas as pl
from jax.experimental.pallas import tpu as pltpu


def _round_up(v, m):
    return (v + m - 1) // m * m


def _ff_kernel(x_ref, wf_ref, bf_ref, w2_ref, b2_ref, w3_ref, b3_ref, o_ref,
               *, d_pad):
    """Fused FF forward for one row-tile of x (weights resident in VMEM).

    x_ref  : (rows, d_pad)            bf16
    wf_ref : (d_pad, d_pad + o_pad)   bf16   == [w1 | w_shortcut]
    bf_ref : (1, d_pad + o_pad)       f32    == [b1 | b_shortcut]
    w2_ref : (d_pad, o_pad)           bf16
    w3_ref : (o_pad, o_pad)           bf16
    o_ref  : (rows, o_pad)            f32
    """
    x = x_ref[...]  # bf16 operands straight into the MXU

    # Fused first matmul: [x @ w1 | x @ ws], f32 accumulation.
    t = jnp.dot(x, wf_ref[...], preferred_element_type=jnp.float32)
    t = t + bf_ref[...]

    h = jnp.maximum(t[:, :d_pad], 0.0)     # block branch (post Linear1 + ReLU)
    s = t[:, d_pad:]                       # linear shortcut (no ReLU)

    h = jnp.dot(h.astype(jnp.bfloat16), w2_ref[...],
                preferred_element_type=jnp.float32) + b2_ref[...]
    h = jnp.maximum(h, 0.0)

    h = jnp.dot(h.astype(jnp.bfloat16), w3_ref[...],
                preferred_element_type=jnp.float32) + b3_ref[...]
    h = jnp.maximum(h, 0.0)

    o_ref[...] = (h + s).astype(o_ref.dtype)


@functools.partial(jax.jit, static_argnames=("row_tile",))
def ff_forward(x, params, *, row_tile=256):
    """x: (N, input_dim) float32. params: dict of f32 weights (see init_ff_params)."""
    n, d_in = x.shape
    d_out = params["w2"].shape[1]

    d_pad = _round_up(d_in, 128)      # lane-aligned contraction / hidden dim
    o_pad = _round_up(d_out, 128)     # lane-dense output dim
    n_pad = _round_up(n, row_tile)

    def pad2(w, r, c):
        return jnp.pad(w, ((0, r - w.shape[0]), (0, c - w.shape[1])))

    # Pad + pack weights. bf16 matmul operands, f32 biases.
    w1 = pad2(params["w1"], d_pad, d_pad)
    ws = pad2(params["ws"], d_pad, o_pad)
    wf = jnp.concatenate([w1, ws], axis=1).astype(jnp.bfloat16)
    bf = jnp.concatenate([pad2(params["b1"], 1, d_pad),
                          pad2(params["bs"], 1, o_pad)], axis=1)
    w2 = pad2(params["w2"], d_pad, o_pad).astype(jnp.bfloat16)
    b2 = pad2(params["b2"], 1, o_pad)
    w3 = pad2(params["w3"], o_pad, o_pad).astype(jnp.bfloat16)
    b3 = pad2(params["b3"], 1, o_pad)

    # Pad x rows/cols with zeros and cast to bf16 (halves the x HBM stream).
    x_p = jnp.pad(x, ((0, n_pad - n), (0, d_pad - d_in))).astype(jnp.bfloat16)

    grid = (n_pad // row_tile,)

    # --- VMEM budget (bytes): resident weights (assume double-buffered by the
    # pipeline), double-buffered x/out tiles, f32 intermediates, plus margin.
    bytes_w = 2 * (d_pad * (d_pad + o_pad) + d_pad * o_pad + o_pad * o_pad)
    bytes_b = 4 * (d_pad + 3 * o_pad)
    bytes_x_tile = 2 * row_tile * d_pad
    bytes_o_tile = 4 * row_tile * o_pad
    bytes_interm = 4 * row_tile * (d_pad + 3 * o_pad)
    vmem_needed = 2 * (bytes_w + bytes_b) + 2 * (bytes_x_tile + bytes_o_tile) \
        + bytes_interm
    vmem_limit = int(min(64 * 1024 * 1024,
                         max(32 * 1024 * 1024, 2 * vmem_needed)))

    flops = 2 * n_pad * (d_pad * (d_pad + o_pad) + d_pad * o_pad + o_pad * o_pad)
    bytes_accessed = (2 * n_pad * d_pad          # x (bf16)
                      + bytes_w + bytes_b        # weights/biases
                      + 4 * n_pad * o_pad)       # out (f32)

    kernel = functools.partial(_ff_kernel, d_pad=d_pad)

    out = pl.pallas_call(
        kernel,
        out_shape=jax.ShapeDtypeStruct((n_pad, o_pad), jnp.float32),
        grid_spec=pltpu.PrefetchScalarGridSpec(
            num_scalar_prefetch=0,
            grid=grid,
            in_specs=[
                pl.BlockSpec((row_tile, d_pad), lambda i: (i, 0)),       # x tile
                pl.BlockSpec((d_pad, d_pad + o_pad), lambda i: (0, 0)),  # [w1|ws]
                pl.BlockSpec((1, d_pad + o_pad), lambda i: (0, 0)),      # [b1|bs]
                pl.BlockSpec((d_pad, o_pad), lambda i: (0, 0)),          # w2
                pl.BlockSpec((1, o_pad), lambda i: (0, 0)),              # b2
                pl.BlockSpec((o_pad, o_pad), lambda i: (0, 0)),          # w3
                pl.BlockSpec((1, o_pad), lambda i: (0, 0)),              # b3
            ],
            out_specs=pl.BlockSpec((row_tile, o_pad), lambda i: (i, 0)),
        ),
        compiler_params=pltpu.CompilerParams(
            dimension_semantics=("parallel",),
            vmem_limit_bytes=vmem_limit,
        ),
        cost_estimate=pl.CostEstimate(
            flops=flops, transcendentals=0, bytes_accessed=bytes_accessed),
    )(x_p, wf, bf, w2, b2, w3, b3)

    return out[:n, :d_out]


def init_ff_params(key, input_dim, output_dim, dtype=jnp.float32):
    """Deterministic init mimicking PyTorch nn.Linear default (U[-1/sqrt(fan_in), +]).

    Weights are stored as (fan_in, fan_out), i.e. already transposed relative to
    PyTorch's (out, in) convention, so the kernel computes x @ W + b.
    """
    keys = jax.random.split(key, 8)

    def linear(kw, kb, fan_in, fan_out):
        bound = 1.0 / jnp.sqrt(fan_in)
        w = jax.random.uniform(kw, (fan_in, fan_out), dtype, -bound, bound)
        b = jax.random.uniform(kb, (1, fan_out), dtype, -bound, bound)
        return w, b

    w1, b1 = linear(keys[0], keys[1], input_dim, input_dim)
    w2, b2 = linear(keys[2], keys[3], input_dim, output_dim)
    w3, b3 = linear(keys[4], keys[5], output_dim, output_dim)
    ws, bs = linear(keys[6], keys[7], input_dim, output_dim)
    return {"w1": w1, "b1": b1, "w2": w2, "b2": b2,
            "w3": w3, "b3": b3, "ws": ws, "bs": bs}


def ff_reference(x, p):
    """Pure-JAX f32 reference of the PyTorch forward, for correctness checking."""
    h = jax.nn.relu(x @ p["w1"] + p["b1"])
    h = jax.nn.relu(h @ p["w2"] + p["b2"])
    h = jax.nn.relu(h @ p["w3"] + p["b3"])
    return h + (x @ p["ws"] + p["bs"])


if __name__ == "__main__":
    key = jax.random.PRNGKey(0)
    k_x, k_p = jax.random.split(key)

    # Small but non-trivial shapes: ragged N (pads to 512 -> 2 grid steps) and
    # non-128-aligned feature dims (exercise the padding path).
    n, input_dim, output_dim = 300, 96, 48
    x = jax.random.normal(k_x, (n, input_dim), jnp.float32)
    params = init_ff_params(k_p, input_dim, output_dim)

    out = ff_forward(x, params)          # row_tile=256 -> grid=(2,)
    out = jax.block_until_ready(out)

    ref = ff_reference(x, params)
    assert out.shape == (n, output_dim)
    max_err = float(jnp.max(jnp.abs(out - ref)))
    # bf16 matmul operands (f32 accumulation) => loosened tolerance vs pure f32.
    assert jnp.allclose(out, ref, atol=5e-2, rtol=5e-2), \
        f"mismatch vs reference, max abs err = {max_err}"

    print("KERNEL_OK")
</pallas_src>

<mosaic_0001>
module attributes {stable_mosaic.version = 11 : i64} {
  func.func @_ff_kernel(%arg0: i32, %arg1: memref<256x128xbf16, #tpu.memory_space<vmem>>, %arg2: memref<128x256xbf16, #tpu.memory_space<vmem>>, %arg3: memref<1x256xf32, #tpu.memory_space<vmem>>, %arg4: memref<128x128xbf16, #tpu.memory_space<vmem>>, %arg5: memref<1x128xf32, #tpu.memory_space<vmem>>, %arg6: memref<128x128xbf16, #tpu.memory_space<vmem>>, %arg7: memref<1x128xf32, #tpu.memory_space<vmem>>, %arg8: memref<256x128xf32, #tpu.memory_space<vmem>>) attributes {dimension_semantics = [#tpu.dimension_semantics<parallel>], iteration_bounds = array<i64: 2>, scalar_prefetch = 0 : i64, scratch_operands = 0 : i64, tpu.core_type = #tpu.core_type<tc>, window_params = [{transform_indices = @transform_0, window_bounds = array<i64: 256, 128>}, {pipeline_mode = #tpu.pipeline_mode<synchronous>, transform_indices = @transform_1, window_bounds = array<i64: 128, 256>}, {pipeline_mode = #tpu.pipeline_mode<synchronous>, transform_indices = @transform_2, window_bounds = array<i64: 1, 256>}, {pipeline_mode = #tpu.pipeline_mode<synchronous>, transform_indices = @transform_3, window_bounds = array<i64: 128, 128>}, {pipeline_mode = #tpu.pipeline_mode<synchronous>, transform_indices = @transform_4, window_bounds = array<i64: 1, 128>}, {pipeline_mode = #tpu.pipeline_mode<synchronous>, transform_indices = @transform_5, window_bounds = array<i64: 128, 128>}, {pipeline_mode = #tpu.pipeline_mode<synchronous>, transform_indices = @transform_6, window_bounds = array<i64: 1, 128>}, {transform_indices = @transform_7, window_bounds = array<i64: 256, 128>}]} {
    %c0 = arith.constant 0 : index
    %c0_0 = arith.constant 0 : index
    %0 = vector.load %arg1[%c0, %c0_0] : memref<256x128xbf16, #tpu.memory_space<vmem>>, vector<256x128xbf16>
    %c0_1 = arith.constant 0 : index
    %c0_2 = arith.constant 0 : index
    %1 = vector.load %arg2[%c0_1, %c0_2] : memref<128x256xbf16, #tpu.memory_space<vmem>>, vector<128x256xbf16>
    %cst = arith.constant dense<0.000000e+00> : vector<256x256xf32>
    %2 = tpu.matmul %0, %1, %cst {dimension_numbers = #tpu.dot_dimension_numbers<[1], [0], [0], [1], [0, 0, 1, 1], [], []>} : vector<256x128xbf16>, vector<128x256xbf16>, vector<256x256xf32> -> vector<256x256xf32>
    %c0_3 = arith.constant 0 : index
    %c0_4 = arith.constant 0 : index
    %3 = vector.load %arg3[%c0_3, %c0_4] : memref<1x256xf32, #tpu.memory_space<vmem>>, vector<1x256xf32>
    %4 = vector.broadcast %3 : vector<1x256xf32> to vector<256x256xf32>
    %5 = arith.addf %2, %4 : vector<256x256xf32>
    %6 = vector.extract_strided_slice %5 {offsets = [0, 0], sizes = [256, 128], strides = [1, 1]} : vector<256x256xf32> to vector<256x128xf32>
    %cst_5 = arith.constant 0.000000e+00 : f32
    %7 = vector.broadcast %cst_5 : f32 to vector<256x128xf32>
    %8 = arith.maximumf %6, %7 : vector<256x128xf32>
    %9 = vector.extract_strided_slice %5 {offsets = [0, 128], sizes = [256, 128], strides = [1, 1]} : vector<256x256xf32> to vector<256x128xf32>
    %10 = arith.truncf %8 : vector<256x128xf32> to vector<256x128xbf16>
    %c0_6 = arith.constant 0 : index
    %c0_7 = arith.constant 0 : index
    %11 = vector.load %arg4[%c0_6, %c0_7] : memref<128x128xbf16, #tpu.memory_space<vmem>>, vector<128x128xbf16>
    %cst_8 = arith.constant dense<0.000000e+00> : vector<256x128xf32>
    %12 = tpu.matmul %10, %11, %cst_8 {dimension_numbers = #tpu.dot_dimension_numbers<[1], [0], [0], [1], [0, 0, 1, 1], [], []>} : vector<256x128xbf16>, vector<128x128xbf16>, vector<256x128xf32> -> vector<256x128xf32>
    %c0_9 = arith.constant 0 : index
    %c0_10 = arith.constant 0 : index
    %13 = vector.load %arg5[%c0_9, %c0_10] : memref<1x128xf32, #tpu.memory_space<vmem>>, vector<1x128xf32>
    %14 = vector.broadcast %13 : vector<1x128xf32> to vector<256x128xf32>
    %15 = arith.addf %12, %14 : vector<256x128xf32>
    %cst_11 = arith.constant 0.000000e+00 : f32
    %16 = vector.broadcast %cst_11 : f32 to vector<256x128xf32>
    %17 = arith.maximumf %15, %16 : vector<256x128xf32>
    %18 = arith.truncf %17 : vector<256x128xf32> to vector<256x128xbf16>
    %c0_12 = arith.constant 0 : index
    %c0_13 = arith.constant 0 : index
    %19 = vector.load %arg6[%c0_12, %c0_13] : memref<128x128xbf16, #tpu.memory_space<vmem>>, vector<128x128xbf16>
    %cst_14 = arith.constant dense<0.000000e+00> : vector<256x128xf32>
    %20 = tpu.matmul %18, %19, %cst_14 {dimension_numbers = #tpu.dot_dimension_numbers<[1], [0], [0], [1], [0, 0, 1, 1], [], []>} : vector<256x128xbf16>, vector<128x128xbf16>, vector<256x128xf32> -> vector<256x128xf32>
    %c0_15 = arith.constant 0 : index
    %c0_16 = arith.constant 0 : index
    %21 = vector.load %arg7[%c0_15, %c0_16] : memref<1x128xf32, #tpu.memory_space<vmem>>, vector<1x128xf32>
    %22 = vector.broadcast %21 : vector<1x128xf32> to vector<256x128xf32>
    %23 = arith.addf %20, %22 : vector<256x128xf32>
    %cst_17 = arith.constant 0.000000e+00 : f32
    %24 = vector.broadcast %cst_17 : f32 to vector<256x128xf32>
    %25 = arith.maximumf %23, %24 : vector<256x128xf32>
    %26 = arith.addf %25, %9 : vector<256x128xf32>
    %c0_18 = arith.constant 0 : index
    %c0_19 = arith.constant 0 : index
    %27 = vector.load %arg8[%c0_18, %c0_19] : memref<256x128xf32, #tpu.memory_space<vmem>>, vector<256x128xf32>
    tpu.vector_store %arg8[%c0_18, %c0_19], %26 {strides = array<i32>} : memref<256x128xf32, #tpu.memory_space<vmem>>, vector<256x128xf32>,
    return
  }
  func.func @transform_0(%arg0: i32) -> (i32, i32) {
    %c0_i32 = arith.constant 0 : i32
    %c0_i32_0 = arith.constant 0 : i32
    return %arg0, %c0_i32 : i32, i32
  }
  func.func @transform_1(%arg0: i32) -> (i32, i32) {
    %c0_i32 = arith.constant 0 : i32
    %c0_i32_0 = arith.constant 0 : i32
    %c0_i32_1 = arith.constant 0 : i32
    return %c0_i32, %c0_i32_0 : i32, i32
  }
  func.func @transform_2(%arg0: i32) -> (i32, i32) {
    %c0_i32 = arith.constant 0 : i32
    %c0_i32_0 = arith.constant 0 : i32
    %c0_i32_1 = arith.constant 0 : i32
    return %c0_i32, %c0_i32_0 : i32, i32
  }
  func.func @transform_3(%arg0: i32) -> (i32, i32) {
    %c0_i32 = arith.constant 0 : i32
    %c0_i32_0 = arith.constant 0 : i32
    %c0_i32_1 = arith.constant 0 : i32
    return %c0_i32, %c0_i32_0 : i32, i32
  }
  func.func @transform_4(%arg0: i32) -> (i32, i32) {
    %c0_i32 = arith.constant 0 : i32
    %c0_i32_0 = arith.constant 0 : i32
    %c0_i32_1 = arith.constant 0 : i32
    return %c0_i32, %c0_i32_0 : i32, i32
  }
  func.func @transform_5(%arg0: i32) -> (i32, i32) {
    %c0_i32 = arith.constant 0 : i32
    %c0_i32_0 = arith.constant 0 : i32
    %c0_i32_1 = arith.constant 0 : i32
    return %c0_i32, %c0_i32_0 : i32, i32
  }
  func.func @transform_6(%arg0: i32) -> (i32, i32) {
    %c0_i32 = arith.constant 0 : i32
    %c0_i32_0 = arith.constant 0 : i32
    %c0_i32_1 = arith.constant 0 : i32
    return %c0_i32, %c0_i32_0 : i32, i32
  }
  func.func @transform_7(%arg0: i32) -> (i32, i32) {
    %c0_i32 = arith.constant 0 : i32
    %c0_i32_0 = arith.constant 0 : i32
    return %arg0, %c0_i32 : i32, i32
  }
}

</mosaic_0001>

<llo_original>
// kernel: ff_forward.1
$region0: #{ff_forward.1}
  #allocation0 [shape = 'u32[]', space=smem, size = 0x4, offset = 0x4, fixed_abs, tag = 'smem constant byte address 0x4 - core index']
  #allocation1 [shape = 'u32[144,128]{1,0:T(1,128)}', space=vmem, size = 0x12000, scoped, tag = 'internal scratch']
  %s0 = inlined_call_operand.vmem [shape: bf16[512,128], index: 0, kind: input, shape index: {}]
  %s1 = inlined_call_operand.vmem [shape: bf16[128,256], index: 1, kind: input, shape index: {}]
  %s2 = inlined_call_operand.vmem [shape: f32[1,256], index: 2, kind: input, shape index: {}]
  %s3 = inlined_call_operand.vmem [shape: bf16[128,128], index: 3, kind: input, shape index: {}]
  %s4 = inlined_call_operand.vmem [shape: f32[1,128], index: 4, kind: input, shape index: {}]
  %s5 = inlined_call_operand.vmem [shape: bf16[128,128], index: 5, kind: input, shape index: {}]
  %s6 = inlined_call_operand.vmem [shape: f32[1,128], index: 6, kind: input, shape index: {}]
  %s7 = inlined_call_operand.vmem [shape: f32[512,128], index: 7, kind: output, shape index: {}]
  %s8 = sld [smem:[#allocation0]]
  $region61: #{ff_forward.1} parent=0
    _
  %s10 = ssub.s32 1, %s8
  %s11 = scalar_select 0, %s10, %s8
  loop: start=0, step=1, limit=4
  $region2: #{ff_forward.1} parent=0 // loop_pre_header
    _
  $region3: #{ff_forward.1} parent=0 // loop_header
    %s13 = sphi 0, %s17
    %p14 = scmp.ge.s32.totalorder %s13, 4
    %s23 = sphi 0, %s25
    %s26 = sphi 0, %s23
    %s27 = sphi 0, %s26
    %s43 = sphi 0, %s27
    %s47 = sphi 0, %s47
    %s49 = sphi 0, %s47
    %s50 = sphi 0, %s49
    %s64 = sphi 0, %s50
    %s68 = sphi 0, %s68
    %s70 = sphi 0, %s68
    %s71 = sphi 0, %s70
    %s85 = sphi 0, %s71
    %s89 = sphi 0, %s89
    %s91 = sphi 0, %s89
    %s92 = sphi 0, %s91
    %s106 = sphi 0, %s92
    %s110 = sphi 0, %s110
    %s112 = sphi 0, %s110
    %s113 = sphi 0, %s112
    %s127 = sphi 0, %s113
    %s131 = sphi 0, %s131
    %s133 = sphi 0, %s131
    %s134 = sphi 0, %s133
    %s148 = sphi 0, %s134
    %s152 = sphi 0, %s152
    %s154 = sphi 0, %s152
    %s155 = sphi 0, %s154
    %s169 = sphi 0, %s155
    %s175 = sphi 0, %s177
    %s178 = sphi 0, %s175
    %s179 = sphi 0, %s178
    %s195 = sphi 0, %s179
  $region4: #{ff_forward.1} parent=0 // loop_header_branch
    %16 = sbr.rel (%p14) target = $region8
  $region5: #{ff_forward.1} parent=0 // loop_body
    %s18 = ssub.s32 %s13, 1
    %s19 = ssub.s32 %s13, 2
    %s20 = sadd.s32 %s13, 1
    %s21 = ssub.s32 %s13, %s20
    %p22 = scmp.eq.s32.totalorder %s21, 0
    %s24 = sadd.s32 %s23, 1
    %s25 = scalar_select %p22, %s23, %s24
    %p28 = pneg %p22
    %p29 = scmp.eq.s32.totalorder %s13, 1
    %p30 = por %p28, %p29
    %p31 = scmp.ne.s32.totalorder %s23, %s26
    %p32 = scmp.eq.s32.totalorder %s13, 0
    %p33 = por %p31, %p32
    %p34 = scmp.ne.s32.totalorder %s23, %s26
    %p35 = scmp.eq.s32.totalorder %s18, 1
    %p36 = por %p34, %p35
    %p37 = scmp.ne.s32.totalorder %s26, %s27
    %p38 = scmp.eq.s32.totalorder %s18, 0
    %p39 = por %p37, %p38
    %p40 = scmp.ne.s32.totalorder %s26, %s27
    %p41 = scmp.eq.s32.totalorder %s19, 1
    %p42 = por %p40, %p41
    %p44 = scmp.ne.s32.totalorder %s27, %s43
    %p45 = scmp.eq.s32.totalorder %s19, 0
    %p46 = por %p44, %p45
    %s48 = sadd.s32 %s47, 1
    %p51 = scmp.eq.s32.totalorder %s13, 1
    %p52 = scmp.ne.s32.totalorder %s47, %s49
    %p53 = scmp.eq.s32.totalorder %s13, 0
    %p54 = por %p52, %p53
    %p55 = scmp.ne.s32.totalorder %s47, %s49
    %p56 = scmp.eq.s32.totalorder %s18, 1
    %p57 = por %p55, %p56
    %p58 = scmp.ne.s32.totalorder %s49, %s50
    %p59 = scmp.eq.s32.totalorder %s18, 0
    %p60 = por %p58, %p59
    %p61 = scmp.ne.s32.totalorder %s49, %s50
    %p62 = scmp.eq.s32.totalorder %s19, 1
    %p63 = por %p61, %p62
    %p65 = scmp.ne.s32.totalorder %s50, %s64
    %p66 = scmp.eq.s32.totalorder %s19, 0
    %p67 = por %p65, %p66
    %s69 = sadd.s32 %s68, 1
    %p72 = scmp.eq.s32.totalorder %s13, 1
    %p73 = scmp.ne.s32.totalorder %s68, %s70
    %p74 = scmp.eq.s32.totalorder %s13, 0
    %p75 = por %p73, %p74
    %p76 = scmp.ne.s32.totalorder %s68, %s70
    %p77 = scmp.eq.s32.totalorder %s18, 1
    %p78 = por %p76, %p77
    %p79 = scmp.ne.s32.totalorder %s70, %s71
    %p80 = scmp.eq.s32.totalorder %s18, 0
    %p81 = por %p79, %p80
    %p82 = scmp.ne.s32.totalorder %s70, %s71
    %p83 = scmp.eq.s32.totalorder %s19, 1
    %p84 = por %p82, %p83
    %p86 = scmp.ne.s32.totalorder %s71, %s85
    %p87 = scmp.eq.s32.totalorder %s19, 0
    %p88 = por %p86, %p87
    %s90 = sadd.s32 %s89, 1
    %p93 = scmp.eq.s32.totalorder %s13, 1
    %p94 = scmp.ne.s32.totalorder %s89, %s91
    %p95 = scmp.eq.s32.totalorder %s13, 0
    %p96 = por %p94, %p95
    %p97 = scmp.ne.s32.totalorder %s89, %s91
    %p98 = scmp.eq.s32.totalorder %s18, 1
    %p99 = por %p97, %p98
    %p100 = scmp.ne.s32.totalorder %s91, %s92
    %p101 = scmp.eq.s32.totalorder %s18, 0
    %p102 = por %p100, %p101
    %p103 = scmp.ne.s32.totalorder %s91, %s92
    %p104 = scmp.eq.s32.totalorder %s19, 1
    %p105 = por %p103, %p104
    %p107 = scmp.ne.s32.totalorder %s92, %s106
    %p108 = scmp.eq.s32.totalorder %s19, 0
    %p109 = por %p107, %p108
    %s111 = sadd.s32 %s110, 1
    %p114 = scmp.eq.s32.totalorder %s13, 1
    %p115 = scmp.ne.s32.totalorder %s110, %s112
    %p116 = scmp.eq.s32.totalorder %s13, 0
    %p117 = por %p115, %p116
    %p118 = scmp.ne.s32.totalorder %s110, %s112
    %p119 = scmp.eq.s32.totalorder %s18, 1
    %p120 = por %p118, %p119
    %p121 = scmp.ne.s32.totalorder %s112, %s113
    %p122 = scmp.eq.s32.totalorder %s18, 0
    %p123 = por %p121, %p122
    %p124 = scmp.ne.s32.totalorder %s112, %s113
    %p125 = scmp.eq.s32.totalorder %s19, 1
    %p126 = por %p124, %p125
    %p128 = scmp.ne.s32.totalorder %s113, %s127
    %p129 = scmp.eq.s32.totalorder %s19, 0
    %p130 = por %p128, %p129
    %s132 = sadd.s32 %s131, 1
    %p135 = scmp.eq.s32.totalorder %s13, 1
    %p136 = scmp.ne.s32.totalorder %s131, %s133
    %p137 = scmp.eq.s32.totalorder %s13, 0
    %p138 = por %p136, %p137
    %p139 = scmp.ne.s32.totalorder %s131, %s133
    %p140 = scmp.eq.s32.totalorder %s18, 1
    %p141 = por %p139, %p140
    %p142 = scmp.ne.s32.totalorder %s133, %s134
    %p143 = scmp.eq.s32.totalorder %s18, 0
    %p144 = por %p142, %p143
    %p145 = scmp.ne.s32.totalorder %s133, %s134
    %p146 = scmp.eq.s32.totalorder %s19, 1
    %p147 = por %p145, %p146
    %p149 = scmp.ne.s32.totalorder %s134, %s148
    %p150 = scmp.eq.s32.totalorder %s19, 0
    %p151 = por %p149, %p150
    %s153 = sadd.s32 %s152, 1
    %p156 = scmp.eq.s32.totalorder %s13, 1
    %p157 = scmp.ne.s32.totalorder %s152, %s154
    %p158 = scmp.eq.s32.totalorder %s13, 0
    %p159 = por %p157, %p158
    %p160 = scmp.ne.s32.totalorder %s152, %s154
    %p161 = scmp.eq.s32.totalorder %s18, 1
    %p162 = por %p160, %p161
    %p163 = scmp.ne.s32.totalorder %s154, %s155
    %p164 = scmp.eq.s32.totalorder %s18, 0
    %p165 = por %p163, %p164
    %p166 = scmp.ne.s32.totalorder %s154, %s155
    %p167 = scmp.eq.s32.totalorder %s19, 1
    %p168 = por %p166, %p167
    %p170 = scmp.ne.s32.totalorder %s155, %s169
    %p171 = scmp.eq.s32.totalorder %s19, 0
    %p172 = por %p170, %p171
    %s173 = ssub.s32 %s13, %s20
    %p174 = scmp.eq.s32.totalorder %s173, 0
    %s176 = sadd.s32 %s175, 1
    %s177 = scalar_select %p174, %s175, %s176
    %p180 = pneg %p174
    %p181 = scmp.eq.s32.totalorder %s13, 1
    %p182 = por %p180, %p181
    %p183 = scmp.ne.s32.totalorder %s175, %s178
    %p184 = scmp.eq.s32.totalorder %s13, 0
    %p185 = por %p183, %p184
    %p186 = scmp.ne.s32.totalorder %s175, %s178
    %p187 = scmp.eq.s32.totalorder %s18, 1
    %p188 = por %p186, %p187
    %p189 = scmp.ne.s32.totalorder %s178, %s179
    %p190 = scmp.eq.s32.totalorder %s18, 0
    %p191 = por %p189, %p190
    %p192 = scmp.ne.s32.totalorder %s178, %s179
    %p193 = scmp.eq.s32.totalorder %s19, 1
    %p194 = por %p192, %p193
    %p196 = scmp.ne.s32.totalorder %s179, %s195
    %p197 = scmp.eq.s32.totalorder %s19, 0
    %p198 = por %p196, %p197
    %p199 = scmp.le.s32.totalorder 1, %s13
    %p200 = scmp.lt.s32.totalorder %s13, 3
    %p201 = pnand %p199, %p200
    %p202 = pneg %p201
    // Predicated region
    $region9: #{ff_forward.1} parent=5 // pred_check
      _
    $region10: #{ff_forward.1} parent=5 // pred_check_branch
      %204 = sbr.rel (%p201) target = $region12
    $region11: #{ff_forward.1} parent=5 // pred_region
      %s205 = ssub.s32 %s13, 1
      // Predicated region
      $region13: #{ff_forward.1} parent=11 // pred_check
        %p206 = pneg %p60
      $region14: #{ff_forward.1} parent=11 // pred_check_branch
        %208 = sbr.rel (%p206) target = $region16
      $region15: #{ff_forward.1} parent=11 // pred_region
        _
      $region16: #{ff_forward.1} parent=11 // pred_fallthru
        _
      // Predicated region
      $region17: #{ff_forward.1} parent=11 // pred_check
        %p209 = pneg %p81
      $region18: #{ff_forward.1} parent=11 // pred_check_branch
        %211 = sbr.rel (%p209) target = $region20
      $region19: #{ff_forward.1} parent=11 // pred_region
        _
      $region20: #{ff_forward.1} parent=11 // pred_fallthru
        _
      // Predicated region
      $region21: #{ff_forward.1} parent=11 // pred_check
        %p212 = pneg %p102
      $region22: #{ff_forward.1} parent=11 // pred_check_branch
        %214 = sbr.rel (%p212) target = $region24
      $region23: #{ff_forward.1} parent=11 // pred_region
        _
      $region24: #{ff_forward.1} parent=11 // pred_fallthru
        _
      // Predicated region
      $region25: #{ff_forward.1} parent=11 // pred_check
        %p215 = pneg %p123
      $region26: #{ff_forward.1} parent=11 // pred_check_branch
        %217 = sbr.rel (%p215) target = $region28
      $region27: #{ff_forward.1} parent=11 // pred_region
        _
      $region28: #{ff_forward.1} parent=11 // pred_fallthru
        _
      // Predicated region
      $region29: #{ff_forward.1} parent=11 // pred_check
        %p218 = pneg %p144
      $region30: #{ff_forward.1} parent=11 // pred_check_branch
        %220 = sbr.rel (%p218) target = $region32
      $region31: #{ff_forward.1} parent=11 // pred_region
        _
      $region32: #{ff_forward.1} parent=11 // pred_fallthru
        _
      // Predicated region
      $region33: #{ff_forward.1} parent=11 // pred_check
        %p221 = pneg %p165
      $region34: #{ff_forward.1} parent=11 // pred_check_branch
        %223 = sbr.rel (%p221) target = $region36
      $region35: #{ff_forward.1} parent=11 // pred_region
        _
      $region36: #{ff_forward.1} parent=11 // pred_fallthru
        _
    $region12: #{ff_forward.1} parent=5 // pred_fallthru
      _
    %p224 = scmp.lt.s32.totalorder %s13, 2
    // Predicated region
    $region37: #{ff_forward.1} parent=5 // pred_check
      %p225 = pneg %p224
    $region38: #{ff_forward.1} parent=5 // pred_check_branch
      %227 = sbr.rel (%p225) target = $region40
    $region39: #{ff_forward.1} parent=5 // pred_region
      // Predicated region
      $region41: #{ff_forward.1} parent=39 // pred_check
        %p228 = pneg %p33
      $region42: #{ff_forward.1} parent=39 // pred_check_branch
        %230 = sbr.rel (%p228) target = $region44
      $region43: #{ff_forward.1} parent=39 // pred_region
        %s231 = smul.u32 32, %s13
        %p232 = scmp.lt.s32.totalorder %s231, 63
        %s233 = scalar_select %p232, %s231, 63
        %s234 = smul.addr %s233, 4
        %s235 = scalar_lea.vmem %s0, %s234
        %s236 = smul.u32 32, %s13
      $region44: #{ff_forward.1} parent=39 // pred_fallthru
        _
    $region40: #{ff_forward.1} parent=5 // pred_fallthru
      _
    %p237 = scmp.le.s32.totalorder 1, %s13
    %p238 = scmp.lt.s32.totalorder %s13, 3
    %p239 = pnand %p237, %p238
    %p240 = pneg %p239
    // Predicated region
    $region45: #{ff_forward.1} parent=5 // pred_check
      _
    $region46: #{ff_forward.1} parent=5 // pred_check_branch
      %242 = sbr.rel (%p239) target = $region48
    $region47: #{ff_forward.1} parent=5 // pred_region
      %s243 = ssub.s32 %s13, 1
      %s244 = smul.u32 32, %s18
      %p245 = scmp.lt.s32.totalorder %s244, 63
      %s246 = scalar_select %p245, %s244, 63
      %s247 = smul.addr %s246, 4
      %s248 = scalar_lea.vmem %s0, %s247
      %p249 = pneg %p39
      %p250 = pneg %p36
      %p251 = pneg %p60
      %p252 = pneg %p57
      %p253 = pneg %p81
      %p254 = pneg %p78
      %p255 = pneg %p102
      %p256 = pneg %p99
      %p257 = pneg %p123
      %p258 = pneg %p120
      %p259 = pneg %p144
      %p260 = pneg %p141
      %p261 = pneg %p165
      %p262 = pneg %p162
      %p263 = pneg %p191
      %p264 = pneg %p188
      %s265 = smul.u32 32, %s18
      %p266 = scmp.lt.s32.totalorder %s265, 63
      %s267 = scalar_select %p266, %s265, 63
      %s268 = smul.addr %s267, 8
      %s269 = scalar_lea.vmem %s7, %s268
      %s270 = smul.u32 32, %s18
      %p271 = scmp.lt.s32.totalorder %s270, 63
      %s272 = scalar_select %p271, %s270, 63
      %s273 = smul.addr %s272, 4
      %s274 = scalar_lea.vmem %s0, %s273
      %s275 = smul.u32 32, %s18
      %s276 = smul.u32 32, %s18
      %p277 = scmp.lt.s32.totalorder %s276, 63
      %s278 = scalar_select %p277, %s276, 63
      %s279 = smul.addr %s278, 8
      %s280 = scalar_lea.vmem %s7, %s279
      %s281 = smul.u32 32, %s18
      %v283 = vld [vmem:[%s274] sm:$0xf]
      %v284 = vld [vmem:[%s274 + $0x4] sm:$0xf]
      %v285 = vld [vmem:[%s274 + $0x8] sm:$0xf]
      %v286 = vld [vmem:[%s274 + $0xc] sm:$0xf]
      %v287 = vld [vmem:[%s274 + $0x10] sm:$0xf]
      %v288 = vld [vmem:[%s274 + $0x14] sm:$0xf]
      %v289 = vld [vmem:[%s274 + $0x18] sm:$0xf]
      %v290 = vld [vmem:[%s274 + $0x1c] sm:$0xf]
      %v291 = vld [vmem:[%s274 + $0x20] sm:$0xf]
      %v292 = vld [vmem:[%s274 + $0x24] sm:$0xf]
      %v293 = vld [vmem:[%s274 + $0x28] sm:$0xf]
      %v294 = vld [vmem:[%s274 + $0x2c] sm:$0xf]
      %v295 = vld [vmem:[%s274 + $0x30] sm:$0xf]
      %v296 = vld [vmem:[%s274 + $0x34] sm:$0xf]
      %v297 = vld [vmem:[%s274 + $0x38] sm:$0xf]
      %v298 = vld [vmem:[%s274 + $0x3c] sm:$0xf]
      %v299 = vld [vmem:[%s274 + $0x40] sm:$0xf]
      %v300 = vld [vmem:[%s274 + $0x44] sm:$0xf]
      %v301 = vld [vmem:[%s274 + $0x48] sm:$0xf]
      %v302 = vld [vmem:[%s274 + $0x4c] sm:$0xf]
      %v303 = vld [vmem:[%s274 + $0x50] sm:$0xf]
      %v304 = vld [vmem:[%s274 + $0x54] sm:$0xf]
      %v305 = vld [vmem:[%s274 + $0x58] sm:$0xf]
      %v306 = vld [vmem:[%s274 + $0x5c] sm:$0xf]
      %v307 = vld [vmem:[%s274 + $0x60] sm:$0xf]
      %v308 = vld [vmem:[%s274 + $0x64] sm:$0xf]
      %v309 = vld [vmem:[%s274 + $0x68] sm:$0xf]
      %v310 = vld [vmem:[%s274 + $0x6c] sm:$0xf]
      %v311 = vld [vmem:[%s274 + $0x70] sm:$0xf]
      %v312 = vld [vmem:[%s274 + $0x74] sm:$0xf]
      %v313 = vld [vmem:[%s274 + $0x78] sm:$0xf]
      %v314 = vld [vmem:[%s274 + $0x7c] sm:$0xf]
      %v315 = vld [vmem:[%s1] sm:$0xff]
      %v316 = vld [vmem:[%s1 + $0x8] sm:$0xff]
      %v317 = vld [vmem:[%s1 + $0x10] sm:$0xff]
      %v318 = vld [vmem:[%s1 + $0x18] sm:$0xff]
      %v319 = vld [vmem:[%s1 + $0x20] sm:$0xff]
      %v320 = vld [vmem:[%s1 + $0x28] sm:$0xff]
      %v321 = vld [vmem:[%s1 + $0x30] sm:$0xff]
      %v322 = vld [vmem:[%s1 + $0x38] sm:$0xff]
      %v323 = vld [vmem:[%s1 + $0x40] sm:$0xff]
      %v324 = vld [vmem:[%s1 + $0x48] sm:$0xff]
      %v325 = vld [vmem:[%s1 + $0x50] sm:$0xff]
      %v326 = vld [vmem:[%s1 + $0x58] sm:$0xff]
      %v327 = vld [vmem:[%s1 + $0x60] sm:$0xff]
      %v328 = vld [vmem:[%s1 + $0x68] sm:$0xff]
      %v329 = vld [vmem:[%s1 + $0x70] sm:$0xff]
      %v330 = vld [vmem:[%s1 + $0x78] sm:$0xff]
      %v331 = vld [vmem:[%s2] sm:$0x3]
      %v333 = vlaneseq
      %v334 = vshrl.u32 %v333, 7
      %v335 = vsub.s32 0, %v334
      %v336 = vrot.slane %v331, %v335
      %v337 = vlaneseq
      %v338 = vshrl.u32 %v337, 7
      %v339 = vsub.s32 1, %v338
      %v340 = vrot.slane %v331, %v339
      %v375 = vunpack.c.l.b16 %v283
      %v376 = vunpack.c.l.b16 %v284
      %v377 = vunpack.c.l.b16 %v285
      %v378 = vunpack.c.l.b16 %v286
      %v379 = vunpack.c.l.b16 %v287
      %v380 = vunpack.c.l.b16 %v288
      %v381 = vunpack.c.l.b16 %v289
      %v382 = vunpack.c.l.b16 %v290
      %v383 = vunpack.c.l.b16 %v291
      %v384 = vunpack.c.l.b16 %v292
      %v385 = vunpack.c.l.b16 %v293
      %v386 = vunpack.c.l.b16 %v294
      %v387 = vunpack.c.l.b16 %v295
      %v388 = vunpack.c.l.b16 %v296
      %v389 = vunpack.c.l.b16 %v297
      %v390 = vunpack.c.l.b16 %v298
      %v391 = vunpack.c.l.b16 %v299
      %v392 = vunpack.c.l.b16 %v300
      %v393 = vunpack.c.l.b16 %v301
      %v394 = vunpack.c.l.b16 %v302
      %v395 = vunpack.c.l.b16 %v303
      %v396 = vunpack.c.l.b16 %v304
      %v397 = vunpack.c.l.b16 %v305
      %v398 = vunpack.c.l.b16 %v306
      %v399 = vunpack.c.l.b16 %v307
      %v400 = vunpack.c.l.b16 %v308
      %v401 = vunpack.c.l.b16 %v309
      %v402 = vunpack.c.l.b16 %v310
      %v403 = vunpack.c.l.b16 %v311
      %v404 = vunpack.c.l.b16 %v312
      %v405 = vunpack.c.l.b16 %v313
      %v406 = vunpack.c.l.b16 %v314
      %v407 = vpack.c.b16 %v376, %v375
      %v408 = vpack.c.b16 %v378, %v377
      %v409 = vpack.c.b16 %v380, %v379
      %v410 = vpack.c.b16 %v382, %v381
      %v411 = vpack.c.b16 %v384, %v383
      %v412 = vpack.c.b16 %v386, %v385
      %v413 = vpack.c.b16 %v388, %v387
      %v414 = vpack.c.b16 %v390, %v389
      %v415 = vpack.c.b16 %v392, %v391
      %v416 = vpack.c.b16 %v394, %v393
      %v417 = vpack.c.b16 %v396, %v395
      %v418 = vpack.c.b16 %v398, %v397
      %v419 = vpack.c.b16 %v400, %v399
      %v420 = vpack.c.b16 %v402, %v401
      %v421 = vpack.c.b16 %v404, %v403
      %v422 = vpack.c.b16 %v406, %v405
      %v455 = vunpack.c.l.b16 %v315
      %v456 = vunpack.c.h.b16 %v315
      %v457 = vunpack.c.l.b16 %v316
      %v458 = vunpack.c.h.b16 %v316
      %v459 = vunpack.c.l.b16 %v317
      %v460 = vunpack.c.h.b16 %v317
      %v461 = vunpack.c.l.b16 %v318
      %v462 = vunpack.c.h.b16 %v318
      %v463 = vunpack.c.l.b16 %v319
      %v464 = vunpack.c.h.b16 %v319
      %v465 = vunpack.c.l.b16 %v320
      %v466 = vunpack.c.h.b16 %v320
      %v467 = vunpack.c.l.b16 %v321
      %v468 = vunpack.c.h.b16 %v321
      %v469 = vunpack.c.l.b16 %v322
      %v470 = vunpack.c.h.b16 %v322
      %v471 = vunpack.c.l.b16 %v323
      %v472 = vunpack.c.h.b16 %v323
      %v473 = vunpack.c.l.b16 %v324
      %v474 = vunpack.c.h.b16 %v324
      %v475 = vunpack.c.l.b16 %v325
      %v476 = vunpack.c.h.b16 %v325
      %v477 = vunpack.c.l.b16 %v326
      %v478 = vunpack.c.h.b16 %v326
      %v479 = vunpack.c.l.b16 %v327
      %v480 = vunpack.c.h.b16 %v327
      %v481 = vunpack.c.l.b16 %v328
      %v482 = vunpack.c.h.b16 %v328
      %v483 = vunpack.c.l.b16 %v329
      %v484 = vunpack.c.h.b16 %v329
      %v485 = vunpack.c.l.b16 %v330
      %v486 = vunpack.c.h.b16 %v330
      %v487 = vpack.c.b16 %v457, %v455
      %v488 = vpack.c.b16 %v458, %v456
      %v489 = vpack.c.b16 %v461, %v459
      %v490 = vpack.c.b16 %v462, %v460
      %v491 = vpack.c.b16 %v465, %v463
      %v492 = vpack.c.b16 %v466, %v464
      %v493 = vpack.c.b16 %v469, %v467
      %v494 = vpack.c.b16 %v470, %v468
      %v495 = vpack.c.b16 %v473, %v471
      %v496 = vpack.c.b16 %v474, %v472
      %v497 = vpack.c.b16 %v477, %v475
      %v498 = vpack.c.b16 %v478, %v476
      %v499 = vpack.c.b16 %v481, %v479
      %v500 = vpack.c.b16 %v482, %v480
      %v501 = vpack.c.b16 %v485, %v483
      %v502 = vpack.c.b16 %v486, %v484
      %519 = vmatprep.subr.bf16.mxu0 %v502
      %520 = vmatpush1.bf16.msra.mxu0 %v501
      %521 = vmatprep.subr.bf16.mxu0 %v500
      %522 = vmatpush1.bf16.msra.mxu0 %v499
      %523 = vmatprep.subr.bf16.mxu0 %v498
      %524 = vmatpush1.bf16.msra.mxu0 %v497
      %525 = vmatprep.subr.bf16.mxu0 %v496
      %526 = vmatpush1.bf16.msra.mxu0 %v495
      %527 = vmatprep.subr.bf16.mxu0 %v494
      %528 = vmatpush1.bf16.msra.mxu0 %v493
      %529 = vmatprep.subr.bf16.mxu0 %v492
      %530 = vmatpush1.bf16.msra.mxu0 %v491
      %531 = vmatprep.subr.bf16.mxu0 %v490
      %532 = vmatpush1.bf16.msra.mxu0 %v489
      %533 = vmatprep.subr.bf16.mxu0 %v488
      %534 = vmatpush1.bf16.msra.mxu0 %v487
      %535 = vmatprep.subr.bf16.mxu0 0
      %536 = vmatpush2.bf16.msra.mxu0 0
      %537 = vmatprep.subr.bf16.mxu0 0
      %538 = vmatpush2.bf16.msra.mxu0 0
      %539 = vmatprep.subr.bf16.mxu0 0
      %540 = vmatpush2.bf16.msra.mxu0 0
      %541 = vmatprep.subr.bf16.mxu0 0
      %542 = vmatpush2.bf16.msra.mxu0 0
      %543 = vmatprep.subr.bf16.mxu0 0
      %544 = vmatpush2.bf16.msra.mxu0 0
      %545 = vmatprep.subr.bf16.mxu0 0
      %546 = vmatpush2.bf16.msra.mxu0 0
      %547 = vmatprep.subr.bf16.mxu0 0
      %548 = vmatpush2.bf16.msra.mxu0 0
      %549 = vmatprep.subr.bf16.mxu0 0
      %550 = vmatpush2.bf16.msra.mxu0 0
      %551 = vmatprep.mubr.bf16.mxu0 0
      %552 = vmatmul.mubr.bf16.gmra.mxu0 %v407
      %v553 = vpop.f32.mrf.mxu0
      %v554 = vadd.f32 %v336, %v553
      %v555 = vpop.f32.mrf.mxu0
      %v556 = vadd.f32 %v340, %v555
      %v557 = vpop.f32.mrf.mxu0
      %v558 = vadd.f32 %v336, %v557
      %v559 = vpop.f32.mrf.mxu0
      %v560 = vadd.f32 %v340, %v559
      %561 = vmatprep.mubr.bf16.mxu0 0
      %562 = vmatmul.mubr.bf16.gmra.mxu0 %v408
      %v563 = vpop.f32.mrf.mxu0
      %v564 = vadd.f32 %v336, %v563
      %v565 = vpop.f32.mrf.mxu0
      %v566 = vadd.f32 %v340, %v565
      %v567 = vpop.f32.mrf.mxu0
      %v568 = vadd.f32 %v336, %v567
      %v569 = vpop.f32.mrf.mxu0
      %v570 = vadd.f32 %v340, %v569
      %571 = vmatprep.mubr.bf16.mxu0 0
      %572 = vmatmul.mubr.bf16.gmra.mxu0 %v409
      %v573 = vpop.f32.mrf.mxu0
      %v574 = vadd.f32 %v336, %v573
      %v575 = vpop.f32.mrf.mxu0
      %v576 = vadd.f32 %v340, %v575
      %v577 = vpop.f32.mrf.mxu0
      %v578 = vadd.f32 %v336, %v577
      %v579 = vpop.f32.mrf.mxu0
      %v580 = vadd.f32 %v340, %v579
      %581 = vmatprep.mubr.bf16.mxu0 0
      %582 = vmatmul.mubr.bf16.gmra.mxu0 %v410
      %v583 = vpop.f32.mrf.mxu0
      %v584 = vadd.f32 %v336, %v583
      %v585 = vpop.f32.mrf.mxu0
      %v586 = vadd.f32 %v340, %v585
      %v587 = vpop.f32.mrf.mxu0
      %v588 = vadd.f32 %v336, %v587
      %v589 = vpop.f32.mrf.mxu0
      %v590 = vadd.f32 %v340, %v589
      %591 = vmatprep.mubr.bf16.mxu0 0
      %592 = vmatmul.mubr.bf16.gmra.mxu0 %v411
      %v593 = vpop.f32.mrf.mxu0
      %v594 = vadd.f32 %v336, %v593
      %v595 = vpop.f32.mrf.mxu0
      %v596 = vadd.f32 %v340, %v595
      %v597 = vpop.f32.mrf.mxu0
      %v598 = vadd.f32 %v336, %v597
      %v599 = vpop.f32.mrf.mxu0
      %v600 = vadd.f32 %v340, %v599
      %601 = vmatprep.mubr.bf16.mxu0 0
      %602 = vmatmul.mubr.bf16.gmra.mxu0 %v412
      %v603 = vpop.f32.mrf.mxu0
      %v604 = vadd.f32 %v336, %v603
      %v605 = vpop.f32.mrf.mxu0
      %v606 = vadd.f32 %v340, %v605
      %v607 = vpop.f32.mrf.mxu0
      %v608 = vadd.f32 %v336, %v607
      %v609 = vpop.f32.mrf.mxu0
      %v610 = vadd.f32 %v340, %v609
      %611 = vmatprep.mubr.bf16.mxu0 0
      %612 = vmatmul.mubr.bf16.gmra.mxu0 %v413
      %v613 = vpop.f32.mrf.mxu0
      %v614 = vadd.f32 %v336, %v613
      %v615 = vpop.f32.mrf.mxu0
      %v616 = vadd.f32 %v340, %v615
      %v617 = vpop.f32.mrf.mxu0
      %v618 = vadd.f32 %v336, %v617
      %v619 = vpop.f32.mrf.mxu0
      %v620 = vadd.f32 %v340, %v619
      %621 = vmatprep.mubr.bf16.mxu0 0
      %622 = vmatmul.mubr.bf16.gmra.mxu0 %v414
      %v623 = vpop.f32.mrf.mxu0
      %v624 = vadd.f32 %v336, %v623
      %v625 = vpop.f32.mrf.mxu0
      %v626 = vadd.f32 %v340, %v625
      %v627 = vpop.f32.mrf.mxu0
      %v628 = vadd.f32 %v336, %v627
      %v629 = vpop.f32.mrf.mxu0
      %v630 = vadd.f32 %v340, %v629
      %631 = vmatprep.mubr.bf16.mxu0 0
      %632 = vmatmul.mubr.bf16.gmra.mxu0 %v415
      %v633 = vpop.f32.mrf.mxu0
      %v634 = vadd.f32 %v336, %v633
      %v635 = vpop.f32.mrf.mxu0
      %v636 = vadd.f32 %v340, %v635
      %v637 = vpop.f32.mrf.mxu0
      %v638 = vadd.f32 %v336, %v637
      %v639 = vpop.f32.mrf.mxu0
      %v640 = vadd.f32 %v340, %v639
      %641 = vmatprep.mubr.bf16.mxu0 0
      %642 = vmatmul.mubr.bf16.gmra.mxu0 %v416
      %v643 = vpop.f32.mrf.mxu0
      %v644 = vadd.f32 %v336, %v643
      %v645 = vpop.f32.mrf.mxu0
      %v646 = vadd.f32 %v340, %v645
      %v647 = vpop.f32.mrf.mxu0
      %v648 = vadd.f32 %v336, %v647
      %v649 = vpop.f32.mrf.mxu0
      %v650 = vadd.f32 %v340, %v649
      %651 = vmatprep.mubr.bf16.mxu0 0
      %652 = vmatmul.mubr.bf16.gmra.mxu0 %v417
      %v653 = vpop.f32.mrf.mxu0
      %v654 = vadd.f32 %v336, %v653
      %v655 = vpop.f32.mrf.mxu0
      %v656 = vadd.f32 %v340, %v655
      %v657 = vpop.f32.mrf.mxu0
      %v658 = vadd.f32 %v336, %v657
      %v659 = vpop.f32.mrf.mxu0
      %v660 = vadd.f32 %v340, %v659
      %661 = vmatprep.mubr.bf16.mxu0 0
      %662 = vmatmul.mubr.bf16.gmra.mxu0 %v418
      %v663 = vpop.f32.mrf.mxu0
      %v664 = vadd.f32 %v336, %v663
      %v665 = vpop.f32.mrf.mxu0
      %v666 = vadd.f32 %v340, %v665
      %v667 = vpop.f32.mrf.mxu0
      %v668 = vadd.f32 %v336, %v667
      %v669 = vpop.f32.mrf.mxu0
      %v670 = vadd.f32 %v340, %v669
      %671 = vmatprep.mubr.bf16.mxu0 0
      %672 = vmatmul.mubr.bf16.gmra.mxu0 %v419
      %v673 = vpop.f32.mrf.mxu0
      %v674 = vadd.f32 %v336, %v673
      %v675 = vpop.f32.mrf.mxu0
      %v676 = vadd.f32 %v340, %v675
      %v677 = vpop.f32.mrf.mxu0
      %v678 = vadd.f32 %v336, %v677
      %v679 = vpop.f32.mrf.mxu0
      %v680 = vadd.f32 %v340, %v679
      %681 = vmatprep.mubr.bf16.mxu0 0
      %682 = vmatmul.mubr.bf16.gmra.mxu0 %v420
      %v683 = vpop.f32.mrf.mxu0
      %v684 = vadd.f32 %v336, %v683
      %v685 = vpop.f32.mrf.mxu0
      %v686 = vadd.f32 %v340, %v685
      %v687 = vpop.f32.mrf.mxu0
      %v688 = vadd.f32 %v336, %v687
      %v689 = vpop.f32.mrf.mxu0
      %v690 = vadd.f32 %v340, %v689
      %691 = vmatprep.mubr.bf16.mxu0 0
      %692 = vmatmul.mubr.bf16.gmra.mxu0 %v421
      %v693 = vpop.f32.mrf.mxu0
      %v694 = vadd.f32 %v336, %v693
      %v695 = vpop.f32.mrf.mxu0
      %v696 = vadd.f32 %v340, %v695
      %v697 = vpop.f32.mrf.mxu0
      %v698 = vadd.f32 %v336, %v697
      %v699 = vpop.f32.mrf.mxu0
      %v700 = vadd.f32 %v340, %v699
      %701 = vmatprep.mubr.bf16.mxu0 0
      %702 = vmatmul.mubr.bf16.gmra.mxu0 %v422
      %v703 = vpop.f32.mrf.mxu0
      %v704 = vadd.f32 %v336, %v703
      %v705 = vpop.f32.mrf.mxu0
      %v706 = vadd.f32 %v340, %v705
      %v707 = vpop.f32.mrf.mxu0
      %v708 = vadd.f32 %v336, %v707
      %v709 = vpop.f32.mrf.mxu0
      %v710 = vadd.f32 %v340, %v709
      %711 = vdwg.mxu0
      %v712 = vmax.f32 %v554, 0.0
      %v713 = vmax.f32 %v558, 0.0
      %v714 = vmax.f32 %v564, 0.0
      %v715 = vmax.f32 %v568, 0.0
      %v716 = vmax.f32 %v574, 0.0
      %v717 = vmax.f32 %v578, 0.0
      %v718 = vmax.f32 %v584, 0.0
      %v719 = vmax.f32 %v588, 0.0
      %v720 = vmax.f32 %v594, 0.0
      %v721 = vmax.f32 %v598, 0.0
      %v722 = vmax.f32 %v604, 0.0
      %v723 = vmax.f32 %v608, 0.0
      %v724 = vmax.f32 %v614, 0.0
      %v725 = vmax.f32 %v618, 0.0
      %v726 = vmax.f32 %v624, 0.0
      %v727 = vmax.f32 %v628, 0.0
      %v728 = vmax.f32 %v634, 0.0
      %v729 = vmax.f32 %v638, 0.0
      %v730 = vmax.f32 %v644, 0.0
      %v731 = vmax.f32 %v648, 0.0
      %v732 = vmax.f32 %v654, 0.0
      %v733 = vmax.f32 %v658, 0.0
      %v734 = vmax.f32 %v664, 0.0
      %v735 = vmax.f32 %v668, 0.0
      %v736 = vmax.f32 %v674, 0.0
      %v737 = vmax.f32 %v678, 0.0
      %v738 = vmax.f32 %v684, 0.0
      %v739 = vmax.f32 %v688, 0.0
      %v740 = vmax.f32 %v694, 0.0
      %v741 = vmax.f32 %v698, 0.0
      %v742 = vmax.f32 %v704, 0.0
      %v743 = vmax.f32 %v708, 0.0
      %v744 = vpack.c.bf16 %v713, %v712
      %v745 = vpack.c.bf16 %v715, %v714
      %v746 = vpack.c.bf16 %v717, %v716
      %v747 = vpack.c.bf16 %v719, %v718
      %v748 = vpack.c.bf16 %v721, %v720
      %v749 = vpack.c.bf16 %v723, %v722
      %v750 = vpack.c.bf16 %v725, %v724
      %v751 = vpack.c.bf16 %v727, %v726
      %v752 = vpack.c.bf16 %v729, %v728
      %v753 = vpack.c.bf16 %v731, %v730
      %v754 = vpack.c.bf16 %v733, %v732
      %v755 = vpack.c.bf16 %v735, %v734
      %v756 = vpack.c.bf16 %v737, %v736
      %v757 = vpack.c.bf16 %v739, %v738
      %v758 = vpack.c.bf16 %v741, %v740
      %v759 = vpack.c.bf16 %v743, %v742
      %v760 = vld [vmem:[%s3] sm:$0xf]
      %v761 = vld [vmem:[%s3 + $0x4] sm:$0xf]
      %v762 = vld [vmem:[%s3 + $0x8] sm:$0xf]
      %v763 = vld [vmem:[%s3 + $0xc] sm:$0xf]
      %v764 = vld [vmem:[%s3 + $0x10] sm:$0xf]
      %v765 = vld [vmem:[%s3 + $0x14] sm:$0xf]
      %v766 = vld [vmem:[%s3 + $0x18] sm:$0xf]
      %v767 = vld [vmem:[%s3 + $0x1c] sm:$0xf]
      %v768 = vld [vmem:[%s3 + $0x20] sm:$0xf]
      %v769 = vld [vmem:[%s3 + $0x24] sm:$0xf]
      %v770 = vld [vmem:[%s3 + $0x28] sm:$0xf]
      %v771 = vld [vmem:[%s3 + $0x2c] sm:$0xf]
      %v772 = vld [vmem:[%s3 + $0x30] sm:$0xf]
      %v773 = vld [vmem:[%s3 + $0x34] sm:$0xf]
      %v774 = vld [vmem:[%s3 + $0x38] sm:$0xf]
      %v775 = vld [vmem:[%s3 + $0x3c] sm:$0xf]
      %v776 = vld [vmem:[%s4] sm:$0x1]
      %v778 = vlaneseq
      %v779 = vshrl.u32 %v778, 7
      %v780 = vsub.s32 0, %v779
      %v781 = vrot.slane %v776, %v780
      %v799 = vunpack.c.l.b16 %v760
      %v800 = vunpack.c.l.b16 %v761
      %v801 = vunpack.c.l.b16 %v762
      %v802 = vunpack.c.l.b16 %v763
      %v803 = vunpack.c.l.b16 %v764
      %v804 = vunpack.c.l.b16 %v765
      %v805 = vunpack.c.l.b16 %v766
      %v806 = vunpack.c.l.b16 %v767
      %v807 = vunpack.c.l.b16 %v768
      %v808 = vunpack.c.l.b16 %v769
      %v809 = vunpack.c.l.b16 %v770
      %v810 = vunpack.c.l.b16 %v771
      %v811 = vunpack.c.l.b16 %v772
      %v812 = vunpack.c.l.b16 %v773
      %v813 = vunpack.c.l.b16 %v774
      %v814 = vunpack.c.l.b16 %v775
      %v815 = vpack.c.b16 %v800, %v799
      %v816 = vpack.c.b16 %v802, %v801
      %v817 = vpack.c.b16 %v804, %v803
      %v818 = vpack.c.b16 %v806, %v805
      %v819 = vpack.c.b16 %v808, %v807
      %v820 = vpack.c.b16 %v810, %v809
      %v821 = vpack.c.b16 %v812, %v811
      %v822 = vpack.c.b16 %v814, %v813
      %831 = vmatprep.subr.bf16.mxu0 0
      %832 = vmatpush1.bf16.msra.mxu0 %v822
      %833 = vmatprep.subr.bf16.mxu0 0
      %834 = vmatpush1.bf16.msra.mxu0 %v821
      %835 = vmatprep.subr.bf16.mxu0 0
      %836 = vmatpush1.bf16.msra.mxu0 %v820
      %837 = vmatprep.subr.bf16.mxu0 0
      %838 = vmatpush1.bf16.msra.mxu0 %v819
      %839 = vmatprep.subr.bf16.mxu0 0
      %840 = vmatpush1.bf16.msra.mxu0 %v818
      %841 = vmatprep.subr.bf16.mxu0 0
      %842 = vmatpush1.bf16.msra.mxu0 %v817
      %843 = vmatprep.subr.bf16.mxu0 0
      %844 = vmatpush1.bf16.msra.mxu0 %v816
      %845 = vmatprep.subr.bf16.mxu0 0
      %846 = vmatpush1.bf16.msra.mxu0 %v815
      %847 = vmatprep.subr.bf16.mxu0 0
      %848 = vmatpush2.bf16.msra.mxu0 0
      %849 = vmatprep.subr.bf16.mxu0 0
      %850 = vmatpush2.bf16.msra.mxu0 0
      %851 = vmatprep.subr.bf16.mxu0 0
      %852 = vmatpush2.bf16.msra.mxu0 0
      %853 = vmatprep.subr.bf16.mxu0 0
      %854 = vmatpush2.bf16.msra.mxu0 0
      %855 = vmatprep.subr.bf16.mxu0 0
      %856 = vmatpush2.bf16.msra.mxu0 0
      %857 = vmatprep.subr.bf16.mxu0 0
      %858 = vmatpush2.bf16.msra.mxu0 0
      %859 = vmatprep.subr.bf16.mxu0 0
      %860 = vmatpush2.bf16.msra.mxu0 0
      %861 = vmatprep.subr.bf16.mxu0 0
      %862 = vmatpush2.bf16.msra.mxu0 0
      %863 = vmatprep.mubr.bf16.mxu0 0
      %864 = vmatmul.mubr.bf16.gmra.mxu0 %v744
      %v865 = vpop.f32.mrf.mxu0
      %v866 = vadd.f32 %v781, %v865
      %v867 = vpop.f32.mrf.mxu0
      %v868 = vpop.f32.mrf.mxu0
      %v869 = vadd.f32 %v781, %v868
      %v870 = vpop.f32.mrf.mxu0
      %871 = vmatprep.mubr.bf16.mxu0 0
      %872 = vmatmul.mubr.bf16.gmra.mxu0 %v745
      %v873 = vpop.f32.mrf.mxu0
      %v874 = vadd.f32 %v781, %v873
      %v875 = vpop.f32.mrf.mxu0
      %v876 = vpop.f32.mrf.mxu0
      %v877 = vadd.f32 %v781, %v876
      %v878 = vpop.f32.mrf.mxu0
      %879 = vmatprep.mubr.bf16.mxu0 0
      %880 = vmatmul.mubr.bf16.gmra.mxu0 %v746
      %v881 = vpop.f32.mrf.mxu0
      %v882 = vadd.f32 %v781, %v881
      %v883 = vpop.f32.mrf.mxu0
      %v884 = vpop.f32.mrf.mxu0
      %v885 = vadd.f32 %v781, %v884
      %v886 = vpop.f32.mrf.mxu0
      %887 = vmatprep.mubr.bf16.mxu0 0
      %888 = vmatmul.mubr.bf16.gmra.mxu0 %v747
      %v889 = vpop.f32.mrf.mxu0
      %v890 = vadd.f32 %v781, %v889
      %v891 = vpop.f32.mrf.mxu0
      %v892 = vpop.f32.mrf.mxu0
      %v893 = vadd.f32 %v781, %v892
      %v894 = vpop.f32.mrf.mxu0
      %895 = vmatprep.mubr.bf16.mxu0 0
      %896 = vmatmul.mubr.bf16.gmra.mxu0 %v748
      %v897 = vpop.f32.mrf.mxu0
      %v898 = vadd.f32 %v781, %v897
      %v899 = vpop.f32.mrf.mxu0
      %v900 = vpop.f32.mrf.mxu0
      %v901 = vadd.f32 %v781, %v900
      %v902 = vpop.f32.mrf.mxu0
      %903 = vmatprep.mubr.bf16.mxu0 0
      %904 = vmatmul.mubr.bf16.gmra.mxu0 %v749
      %v905 = vpop.f32.mrf.mxu0
      %v906 = vadd.f32 %v781, %v905
      %v907 = vpop.f32.mrf.mxu0
      %v908 = vpop.f32.mrf.mxu0
      %v909 = vadd.f32 %v781, %v908
      %v910 = vpop.f32.mrf.mxu0
      %911 = vmatprep.mubr.bf16.mxu0 0
      %912 = vmatmul.mubr.bf16.gmra.mxu0 %v750
      %v913 = vpop.f32.mrf.mxu0
      %v914 = vadd.f32 %v781, %v913
      %v915 = vpop.f32.mrf.mxu0
      %v916 = vpop.f32.mrf.mxu0
      %v917 = vadd.f32 %v781, %v916
      %v918 = vpop.f32.mrf.mxu0
      %919 = vmatprep.mubr.bf16.mxu0 0
      %920 = vmatmul.mubr.bf16.gmra.mxu0 %v751
      %v921 = vpop.f32.mrf.mxu0
      %v922 = vadd.f32 %v781, %v921
      %v923 = vpop.f32.mrf.mxu0
      %v924 = vpop.f32.mrf.mxu0
      %v925 = vadd.f32 %v781, %v924
      %v926 = vpop.f32.mrf.mxu0
      %927 = vmatprep.mubr.bf16.mxu0 0
      %928 = vmatmul.mubr.bf16.gmra.mxu0 %v752
      %v929 = vpop.f32.mrf.mxu0
      %v930 = vadd.f32 %v781, %v929
      %v931 = vpop.f32.mrf.mxu0
      %v932 = vpop.f32.mrf.mxu0
      %v933 = vadd.f32 %v781, %v932
      %v934 = vpop.f32.mrf.mxu0
      %935 = vmatprep.mubr.bf16.mxu0 0
      %936 = vmatmul.mubr.bf16.gmra.mxu0 %v753
      %v937 = vpop.f32.mrf.mxu0
      %v938 = vadd.f32 %v781, %v937
      %v939 = vpop.f32.mrf.mxu0
      %v940 = vpop.f32.mrf.mxu0
      %v941 = vadd.f32 %v781, %v940
      %v942 = vpop.f32.mrf.mxu0
      %943 = vmatprep.mubr.bf16.mxu0 0
      %944 = vmatmul.mubr.bf16.gmra.mxu0 %v754
      %v945 = vpop.f32.mrf.mxu0
      %v946 = vadd.f32 %v781, %v945
      %v947 = vpop.f32.mrf.mxu0
      %v948 = vpop.f32.mrf.mxu0
      %v949 = vadd.f32 %v781, %v948
      %v950 = vpop.f32.mrf.mxu0
      %951 = vmatprep.mubr.bf16.mxu0 0
      %952 = vmatmul.mubr.bf16.gmra.mxu0 %v755
      %v953 = vpop.f32.mrf.mxu0
      %v954 = vadd.f32 %v781, %v953
      %v955 = vpop.f32.mrf.mxu0
      %v956 = vpop.f32.mrf.mxu0
      %v957 = vadd.f32 %v781, %v956
      %v958 = vpop.f32.mrf.mxu0
      %959 = vmatprep.mubr.bf16.mxu0 0
      %960 = vmatmul.mubr.bf16.gmra.mxu0 %v756
      %v961 = vpop.f32.mrf.mxu0
      %v962 = vadd.f32 %v781, %v961
      %v963 = vpop.f32.mrf.mxu0
      %v964 = vpop.f32.mrf.mxu0
      %v965 = vadd.f32 %v781, %v964
      %v966 = vpop.f32.mrf.mxu0
      %967 = vmatprep.mubr.bf16.mxu0 0
      %968 = vmatmul.mubr.bf16.gmra.mxu0 %v757
      %v969 = vpop.f32.mrf.mxu0
      %v970 = vadd.f32 %v781, %v969
      %v971 = vpop.f32.mrf.mxu0
      %v972 = vpop.f32.mrf.mxu0
      %v973 = vadd.f32 %v781, %v972
      %v974 = vpop.f32.mrf.mxu0
      %975 = vmatprep.mubr.bf16.mxu0 0
      %976 = vmatmul.mubr.bf16.gmra.mxu0 %v758
      %v977 = vpop.f32.mrf.mxu0
      %v978 = vadd.f32 %v781, %v977
      %v979 = vpop.f32.mrf.mxu0
      %v980 = vpop.f32.mrf.mxu0
      %v981 = vadd.f32 %v781, %v980
      %v982 = vpop.f32.mrf.mxu0
      %983 = vmatprep.mubr.bf16.mxu0 0
      %984 = vmatmul.mubr.bf16.gmra.mxu0 %v759
      %v985 = vpop.f32.mrf.mxu0
      %v986 = vadd.f32 %v781, %v985
      %v987 = vpop.f32.mrf.mxu0
      %v988 = vpop.f32.mrf.mxu0
      %v989 = vadd.f32 %v781, %v988
      %v990 = vpop.f32.mrf.mxu0
      %991 = vdwg.mxu0
      %v992 = vmax.f32 %v866, 0.0
      %v993 = vmax.f32 %v869, 0.0
      %v994 = vmax.f32 %v874, 0.0
      %v995 = vmax.f32 %v877, 0.0
      %v996 = vmax.f32 %v882, 0.0
      %v997 = vmax.f32 %v885, 0.0
      %v998 = vmax.f32 %v890, 0.0
      %v999 = vmax.f32 %v893, 0.0
      %v1000 = vmax.f32 %v898, 0.0
      %v1001 = vmax.f32 %v901, 0.0
      %v1002 = vmax.f32 %v906, 0.0
      %v1003 = vmax.f32 %v909, 0.0
      %v1004 = vmax.f32 %v914, 0.0
      %v1005 = vmax.f32 %v917, 0.0
      %v1006 = vmax.f32 %v922, 0.0
      %v1007 = vmax.f32 %v925, 0.0
      %v1008 = vmax.f32 %v930, 0.0
      %v1009 = vmax.f32 %v933, 0.0
      %v1010 = vmax.f32 %v938, 0.0
      %v1011 = vmax.f32 %v941, 0.0
      %v1012 = vmax.f32 %v946, 0.0
      %v1013 = vmax.f32 %v949, 0.0
      %v1014 = vmax.f32 %v954, 0.0
      %v1015 = vmax.f32 %v957, 0.0
      %v1016 = vmax.f32 %v962, 0.0
      %v1017 = vmax.f32 %v965, 0.0
      %v1018 = vmax.f32 %v970, 0.0
      %v1019 = vmax.f32 %v973, 0.0
      %v1020 = vmax.f32 %v978, 0.0
      %v1021 = vmax.f32 %v981, 0.0
      %v1022 = vmax.f32 %v986, 0.0
      %v1023 = vmax.f32 %v989, 0.0
      %v1024 = vpack.c.bf16 %v993, %v992
      %v1025 = vpack.c.bf16 %v995, %v994
      %v1026 = vpack.c.bf16 %v997, %v996
      %v1027 = vpack.c.bf16 %v999, %v998
      %v1028 = vpack.c.bf16 %v1001, %v1000
      %v1029 = vpack.c.bf16 %v1003, %v1002
      %v1030 = vpack.c.bf16 %v1005, %v1004
      %v1031 = vpack.c.bf16 %v1007, %v1006
      %v1032 = vpack.c.bf16 %v1009, %v1008
      %v1033 = vpack.c.bf16 %v1011, %v1010
      %v1034 = vpack.c.bf16 %v1013, %v1012
      %v1035 = vpack.c.bf16 %v1015, %v1014
      %v1036 = vpack.c.bf16 %v1017, %v1016
      %v1037 = vpack.c.bf16 %v1019, %v1018
      %v1038 = vpack.c.bf16 %v1021, %v1020
      %v1039 = vpack.c.bf16 %v1023, %v1022
      %v1040 = vld [vmem:[%s5] sm:$0xf]
      %v1041 = vld [vmem:[%s5 + $0x4] sm:$0xf]
      %v1042 = vld [vmem:[%s5 + $0x8] sm:$0xf]
      %v1043 = vld [vmem:[%s5 + $0xc] sm:$0xf]
      %v1044 = vld [vmem:[%s5 + $0x10] sm:$0xf]
      %v1045 = vld [vmem:[%s5 + $0x14] sm:$0xf]
      %v1046 = vld [vmem:[%s5 + $0x18] sm:$0xf]
      %v1047 = vld [vmem:[%s5 + $0x1c] sm:$0xf]
      %v1048 = vld [vmem:[%s5 + $0x20] sm:$0xf]
      %v1049 = vld [vmem:[%s5 + $0x24] sm:$0xf]
      %v1050 = vld [vmem:[%s5 + $0x28] sm:$0xf]
      %v1051 = vld [vmem:[%s5 + $0x2c] sm:$0xf]
      %v1052 = vld [vmem:[%s5 + $0x30] sm:$0xf]
      %v1053 = vld [vmem:[%s5 + $0x34] sm:$0xf]
      %v1054 = vld [vmem:[%s5 + $0x38] sm:$0xf]
      %v1055 = vld [vmem:[%s5 + $0x3c] sm:$0xf]
      %v1056 = vld [vmem:[%s6] sm:$0x1]
      %v1058 = vlaneseq
      %v1059 = vshrl.u32 %v1058, 7
      %v1060 = vsub.s32 0, %v1059
      %v1061 = vrot.slane %v1056, %v1060
      %v1079 = vunpack.c.l.b16 %v1040
      %v1080 = vunpack.c.l.b16 %v1041
      %v1081 = vunpack.c.l.b16 %v1042
      %v1082 = vunpack.c.l.b16 %v1043
      %v1083 = vunpack.c.l.b16 %v1044
      %v1084 = vunpack.c.l.b16 %v1045
      %v1085 = vunpack.c.l.b16 %v1046
      %v1086 = vunpack.c.l.b16 %v1047
      %v1087 = vunpack.c.l.b16 %v1048
      %v1088 = vunpack.c.l.b16 %v1049
      %v1089 = vunpack.c.l.b16 %v1050
      %v1090 = vunpack.c.l.b16 %v1051
      %v1091 = vunpack.c.l.b16 %v1052
      %v1092 = vunpack.c.l.b16 %v1053
      %v1093 = vunpack.c.l.b16 %v1054
      %v1094 = vunpack.c.l.b16 %v1055
      %v1095 = vpack.c.b16 %v1080, %v1079
      %v1096 = vpack.c.b16 %v1082, %v1081
      %v1097 = vpack.c.b16 %v1084, %v1083
      %v1098 = vpack.c.b16 %v1086, %v1085
      %v1099 = vpack.c.b16 %v1088, %v1087
      %v1100 = vpack.c.b16 %v1090, %v1089
      %v1101 = vpack.c.b16 %v1092, %v1091
      %v1102 = vpack.c.b16 %v1094, %v1093
      %1111 = vmatprep.subr.bf16.mxu0 0
      %1112 = vmatpush1.bf16.msra.mxu0 %v1102
      %1113 = vmatprep.subr.bf16.mxu0 0
      %1114 = vmatpush1.bf16.msra.mxu0 %v1101
      %1115 = vmatprep.subr.bf16.mxu0 0
      %1116 = vmatpush1.bf16.msra.mxu0 %v1100
      %1117 = vmatprep.subr.bf16.mxu0 0
      %1118 = vmatpush1.bf16.msra.mxu0 %v1099
      %1119 = vmatprep.subr.bf16.mxu0 0
      %1120 = vmatpush1.bf16.msra.mxu0 %v1098
      %1121 = vmatprep.subr.bf16.mxu0 0
      %1122 = vmatpush1.bf16.msra.mxu0 %v1097
      %1123 = vmatprep.subr.bf16.mxu0 0
      %1124 = vmatpush1.bf16.msra.mxu0 %v1096
      %1125 = vmatprep.subr.bf16.mxu0 0
      %1126 = vmatpush1.bf16.msra.mxu0 %v1095
      %1127 = vmatprep.subr.bf16.mxu0 0
      %1128 = vmatpush2.bf16.msra.mxu0 0
      %1129 = vmatprep.subr.bf16.mxu0 0
      %1130 = vmatpush2.bf16.msra.mxu0 0
      %1131 = vmatprep.subr.bf16.mxu0 0
      %1132 = vmatpush2.bf16.msra.mxu0 0
      %1133 = vmatprep.subr.bf16.mxu0 0
      %1134 = vmatpush2.bf16.msra.mxu0 0
      %1135 = vmatprep.subr.bf16.mxu0 0
      %1136 = vmatpush2.bf16.msra.mxu0 0
      %1137 = vmatprep.subr.bf16.mxu0 0
      %1138 = vmatpush2.bf16.msra.mxu0 0
      %1139 = vmatprep.subr.bf16.mxu0 0
      %1140 = vmatpush2.bf16.msra.mxu0 0
      %1141 = vmatprep.subr.bf16.mxu0 0
      %1142 = vmatpush2.bf16.msra.mxu0 0
      %1143 = vmatprep.mubr.bf16.mxu0 0
      %1144 = vmatmul.mubr.bf16.gmra.mxu0 %v1024
      %v1145 = vpop.f32.mrf.mxu0
      %v1146 = vadd.f32 %v1061, %v1145
      %v1147 = vpop.f32.mrf.mxu0
      %v1148 = vpop.f32.mrf.mxu0
      %v1149 = vadd.f32 %v1061, %v1148
      %v1150 = vpop.f32.mrf.mxu0
      %1151 = vmatprep.mubr.bf16.mxu0 0
      %1152 = vmatmul.mubr.bf16.gmra.mxu0 %v1025
      %v1153 = vpop.f32.mrf.mxu0
      %v1154 = vadd.f32 %v1061, %v1153
      %v1155 = vpop.f32.mrf.mxu0
      %v1156 = vpop.f32.mrf.mxu0
      %v1157 = vadd.f32 %v1061, %v1156
      %v1158 = vpop.f32.mrf.mxu0
      %1159 = vmatprep.mubr.bf16.mxu0 0
      %1160 = vmatmul.mubr.bf16.gmra.mxu0 %v1026
      %v1161 = vpop.f32.mrf.mxu0
      %v1162 = vadd.f32 %v1061, %v1161
      %v1163 = vpop.f32.mrf.mxu0
      %v1164 = vpop.f32.mrf.mxu0
      %v1165 = vadd.f32 %v1061, %v1164
      %v1166 = vpop.f32.mrf.mxu0
      %1167 = vmatprep.mubr.bf16.mxu0 0
      %1168 = vmatmul.mubr.bf16.gmra.mxu0 %v1027
      %v1169 = vpop.f32.mrf.mxu0
      %v1170 = vadd.f32 %v1061, %v1169
      %v1171 = vpop.f32.mrf.mxu0
      %v1172 = vpop.f32.mrf.mxu0
      %v1173 = vadd.f32 %v1061, %v1172
      %v1174 = vpop.f32.mrf.mxu0
      %1175 = vmatprep.mubr.bf16.mxu0 0
      %1176 = vmatmul.mubr.bf16.gmra.mxu0 %v1028
      %v1177 = vpop.f32.mrf.mxu0
      %v1178 = vadd.f32 %v1061, %v1177
      %v1179 = vpop.f32.mrf.mxu0
      %v1180 = vpop.f32.mrf.mxu0
      %v1181 = vadd.f32 %v1061, %v1180
      %v1182 = vpop.f32.mrf.mxu0
      %1183 = vmatprep.mubr.bf16.mxu0 0
      %1184 = vmatmul.mubr.bf16.gmra.mxu0 %v1029
      %v1185 = vpop.f32.mrf.mxu0
      %v1186 = vadd.f32 %v1061, %v1185
      %v1187 = vpop.f32.mrf.mxu0
      %v1188 = vpop.f32.mrf.mxu0
      %v1189 = vadd.f32 %v1061, %v1188
      %v1190 = vpop.f32.mrf.mxu0
      %1191 = vmatprep.mubr.bf16.mxu0 0
      %1192 = vmatmul.mubr.bf16.gmra.mxu0 %v1030
      %v1193 = vpop.f32.mrf.mxu0
      %v1194 = vadd.f32 %v1061, %v1193
      %v1195 = vpop.f32.mrf.mxu0
      %v1196 = vpop.f32.mrf.mxu0
      %v1197 = vadd.f32 %v1061, %v1196
      %v1198 = vpop.f32.mrf.mxu0
      %1199 = vmatprep.mubr.bf16.mxu0 0
      %1200 = vmatmul.mubr.bf16.gmra.mxu0 %v1031
      %v1201 = vpop.f32.mrf.mxu0
      %v1202 = vadd.f32 %v1061, %v1201
      %v1203 = vpop.f32.mrf.mxu0
      %v1204 = vpop.f32.mrf.mxu0
      %v1205 = vadd.f32 %v1061, %v1204
      %v1206 = vpop.f32.mrf.mxu0
      %1207 = vmatprep.mubr.bf16.mxu0 0
      %1208 = vmatmul.mubr.bf16.gmra.mxu0 %v1032
      %v1209 = vpop.f32.mrf.mxu0
      %v1210 = vadd.f32 %v1061, %v1209
      %v1211 = vpop.f32.mrf.mxu0
      %v1212 = vpop.f32.mrf.mxu0
      %v1213 = vadd.f32 %v1061, %v1212
      %v1214 = vpop.f32.mrf.mxu0
      %1215 = vmatprep.mubr.bf16.mxu0 0
      %1216 = vmatmul.mubr.bf16.gmra.mxu0 %v1033
      %v1217 = vpop.f32.mrf.mxu0
      %v1218 = vadd.f32 %v1061, %v1217
      %v1219 = vpop.f32.mrf.mxu0
      %v1220 = vpop.f32.mrf.mxu0
      %v1221 = vadd.f32 %v1061, %v1220
      %v1222 = vpop.f32.mrf.mxu0
      %1223 = vmatprep.mubr.bf16.mxu0 0
      %1224 = vmatmul.mubr.bf16.gmra.mxu0 %v1034
      %v1225 = vpop.f32.mrf.mxu0
      %v1226 = vadd.f32 %v1061, %v1225
      %v1227 = vpop.f32.mrf.mxu0
      %v1228 = vpop.f32.mrf.mxu0
      %v1229 = vadd.f32 %v1061, %v1228
      %v1230 = vpop.f32.mrf.mxu0
      %1231 = vmatprep.mubr.bf16.mxu0 0
      %1232 = vmatmul.mubr.bf16.gmra.mxu0 %v1035
      %v1233 = vpop.f32.mrf.mxu0
      %v1234 = vadd.f32 %v1061, %v1233
      %v1235 = vpop.f32.mrf.mxu0
      %v1236 = vpop.f32.mrf.mxu0
      %v1237 = vadd.f32 %v1061, %v1236
      %v1238 = vpop.f32.mrf.mxu0
      %1239 = vmatprep.mubr.bf16.mxu0 0
      %1240 = vmatmul.mubr.bf16.gmra.mxu0 %v1036
      %v1241 = vpop.f32.mrf.mxu0
      %v1242 = vadd.f32 %v1061, %v1241
      %v1243 = vpop.f32.mrf.mxu0
      %v1244 = vpop.f32.mrf.mxu0
      %v1245 = vadd.f32 %v1061, %v1244
      %v1246 = vpop.f32.mrf.mxu0
      %1247 = vmatprep.mubr.bf16.mxu0 0
      %1248 = vmatmul.mubr.bf16.gmra.mxu0 %v1037
      %v1249 = vpop.f32.mrf.mxu0
      %v1250 = vadd.f32 %v1061, %v1249
      %v1251 = vpop.f32.mrf.mxu0
      %v1252 = vpop.f32.mrf.mxu0
      %v1253 = vadd.f32 %v1061, %v1252
      %v1254 = vpop.f32.mrf.mxu0
      %1255 = vmatprep.mubr.bf16.mxu0 0
      %1256 = vmatmul.mubr.bf16.gmra.mxu0 %v1038
      %v1257 = vpop.f32.mrf.mxu0
      %v1258 = vadd.f32 %v1061, %v1257
      %v1259 = vpop.f32.mrf.mxu0
      %v1260 = vpop.f32.mrf.mxu0
      %v1261 = vadd.f32 %v1061, %v1260
      %v1262 = vpop.f32.mrf.mxu0
      %1263 = vmatprep.mubr.bf16.mxu0 0
      %1264 = vmatmul.mubr.bf16.gmra.mxu0 %v1039
      %v1265 = vpop.f32.mrf.mxu0
      %v1266 = vadd.f32 %v1061, %v1265
      %v1267 = vpop.f32.mrf.mxu0
      %v1268 = vpop.f32.mrf.mxu0
      %v1269 = vadd.f32 %v1061, %v1268
      %v1270 = vpop.f32.mrf.mxu0
      %1271 = vdwg.mxu0
      %v1272 = vmax.f32 %v1146, 0.0
      %v1273 = vmax.f32 %v1149, 0.0
      %v1274 = vmax.f32 %v1154, 0.0
      %v1275 = vmax.f32 %v1157, 0.0
      %v1276 = vmax.f32 %v1162, 0.0
      %v1277 = vmax.f32 %v1165, 0.0
      %v1278 = vmax.f32 %v1170, 0.0
      %v1279 = vmax.f32 %v1173, 0.0
      %v1280 = vmax.f32 %v1178, 0.0
      %v1281 = vmax.f32 %v1181, 0.0
      %v1282 = vmax.f32 %v1186, 0.0
      %v1283 = vmax.f32 %v1189, 0.0
      %v1284 = vmax.f32 %v1194, 0.0
      %v1285 = vmax.f32 %v1197, 0.0
      %v1286 = vmax.f32 %v1202, 0.0
      %v1287 = vmax.f32 %v1205, 0.0
      %v1288 = vmax.f32 %v1210, 0.0
      %v1289 = vmax.f32 %v1213, 0.0
      %v1290 = vmax.f32 %v1218, 0.0
      %v1291 = vmax.f32 %v1221, 0.0
      %v1292 = vmax.f32 %v1226, 0.0
      %v1293 = vmax.f32 %v1229, 0.0
      %v1294 = vmax.f32 %v1234, 0.0
      %v1295 = vmax.f32 %v1237, 0.0
      %v1296 = vmax.f32 %v1242, 0.0
      %v1297 = vmax.f32 %v1245, 0.0
      %v1298 = vmax.f32 %v1250, 0.0
      %v1299 = vmax.f32 %v1253, 0.0
      %v1300 = vmax.f32 %v1258, 0.0
      %v1301 = vmax.f32 %v1261, 0.0
      %v1302 = vmax.f32 %v1266, 0.0
      %v1303 = vmax.f32 %v1269, 0.0
      %v1304 = vadd.f32 %v1272, %v556
      %v1305 = vadd.f32 %v1273, %v560
      %v1306 = vadd.f32 %v1274, %v566
      %v1307 = vadd.f32 %v1275, %v570
      %v1308 = vadd.f32 %v1276, %v576
      %v1309 = vadd.f32 %v1277, %v580
      %v1310 = vadd.f32 %v1278, %v586
      %v1311 = vadd.f32 %v1279, %v590
      %v1312 = vadd.f32 %v1280, %v596
      %v1313 = vadd.f32 %v1281, %v600
      %v1314 = vadd.f32 %v1282, %v606
      %v1315 = vadd.f32 %v1283, %v610
      %v1316 = vadd.f32 %v1284, %v616
      %v1317 = vadd.f32 %v1285, %v620
      %v1318 = vadd.f32 %v1286, %v626
      %v1319 = vadd.f32 %v1287, %v630
      %v1320 = vadd.f32 %v1288, %v636
      %v1321 = vadd.f32 %v1289, %v640
      %v1322 = vadd.f32 %v1290, %v646
      %v1323 = vadd.f32 %v1291, %v650
      %v1324 = vadd.f32 %v1292, %v656
      %v1325 = vadd.f32 %v1293, %v660
      %v1326 = vadd.f32 %v1294, %v666
      %v1327 = vadd.f32 %v1295, %v670
      %v1328 = vadd.f32 %v1296, %v676
      %v1329 = vadd.f32 %v1297, %v680
      %v1330 = vadd.f32 %v1298, %v686
      %v1331 = vadd.f32 %v1299, %v690
      %v1332 = vadd.f32 %v1300, %v696
      %v1333 = vadd.f32 %v1301, %v700
      %v1334 = vadd.f32 %v1302, %v706
      %v1335 = vadd.f32 %v1303, %v710
      %1336 = vst [vmem:[%s280] sm:$0xff] %v1304
      %1337 = vst [vmem:[%s280 + $0x8] sm:$0xff] %v1305
      %1338 = vst [vmem:[%s280 + $0x10] sm:$0xff] %v1306
      %1339 = vst [vmem:[%s280 + $0x18] sm:$0xff] %v1307
      %1340 = vst [vmem:[%s280 + $0x20] sm:$0xff] %v1308
      %1341 = vst [vmem:[%s280 + $0x28] sm:$0xff] %v1309
      %1342 = vst [vmem:[%s280 + $0x30] sm:$0xff] %v1310
      %1343 = vst [vmem:[%s280 + $0x38] sm:$0xff] %v1311
      %1344 = vst [vmem:[%s280 + $0x40] sm:$0xff] %v1312
      %1345 = vst [vmem:[%s280 + $0x48] sm:$0xff] %v1313
      %1346 = vst [vmem:[%s280 + $0x50] sm:$0xff] %v1314
      %1347 = vst [vmem:[%s280 + $0x58] sm:$0xff] %v1315
      %1348 = vst [vmem:[%s280 + $0x60] sm:$0xff] %v1316
      %1349 = vst [vmem:[%s280 + $0x68] sm:$0xff] %v1317
      %1350 = vst [vmem:[%s280 + $0x70] sm:$0xff] %v1318
      %1351 = vst [vmem:[%s280 + $0x78] sm:$0xff] %v1319
      %1352 = vst [vmem:[%s280 + $0x80] sm:$0xff] %v1320
      %1353 = vst [vmem:[%s280 + $0x88] sm:$0xff] %v1321
      %1354 = vst [vmem:[%s280 + $0x90] sm:$0xff] %v1322
      %1355 = vst [vmem:[%s280 + $0x98] sm:$0xff] %v1323
      %1356 = vst [vmem:[%s280 + $0xa0] sm:$0xff] %v1324
      %1357 = vst [vmem:[%s280 + $0xa8] sm:$0xff] %v1325
      %1358 = vst [vmem:[%s280 + $0xb0] sm:$0xff] %v1326
      %1359 = vst [vmem:[%s280 + $0xb8] sm:$0xff] %v1327
      %1360 = vst [vmem:[%s280 + $0xc0] sm:$0xff] %v1328
      %1361 = vst [vmem:[%s280 + $0xc8] sm:$0xff] %v1329
      %1362 = vst [vmem:[%s280 + $0xd0] sm:$0xff] %v1330
      %1363 = vst [vmem:[%s280 + $0xd8] sm:$0xff] %v1331
      %1364 = vst [vmem:[%s280 + $0xe0] sm:$0xff] %v1332
      %1365 = vst [vmem:[%s280 + $0xe8] sm:$0xff] %v1333
      %1366 = vst [vmem:[%s280 + $0xf0] sm:$0xff] %v1334
      %1367 = vst [vmem:[%s280 + $0xf8] sm:$0xff] %v1335
      %s1368 = smul.u32 32, %s18
      %p1369 = scmp.lt.s32.totalorder %s1368, 63
      %s1370 = scalar_select %p1369, %s1368, 63
      %s1371 = smul.addr %s1370, 8
      %s1372 = scalar_lea.vmem %s7, %s1371
      // Predicated region
      $region49: #{ff_forward.1} parent=47 // pred_check
        %p1373 = pneg %p188
      $region50: #{ff_forward.1} parent=47 // pred_check_branch
        %1375 = sbr.rel (%p1373) target = $region52
      $region51: #{ff_forward.1} parent=47 // pred_region
        %s1376 = smul.u32 32, %s18
      $region52: #{ff_forward.1} parent=47 // pred_fallthru
        _
    $region48: #{ff_forward.1} parent=5 // pred_fallthru
      _
    %p1377 = scmp.le.s32.totalorder 2, %s13
    // Predicated region
    $region53: #{ff_forward.1} parent=5 // pred_check
      %p1378 = pneg %p1377
    $region54: #{ff_forward.1} parent=5 // pred_check_branch
      %1380 = sbr.rel (%p1378) target = $region56
    $region55: #{ff_forward.1} parent=5 // pred_region
      %s1381 = ssub.s32 %s13, 2
      // Predicated region
      $region57: #{ff_forward.1} parent=55 // pred_check
        %p1382 = pneg %p194
      $region58: #{ff_forward.1} parent=55 // pred_check_branch
        %1384 = sbr.rel (%p1382) target = $region60
      $region59: #{ff_forward.1} parent=55 // pred_region
        %s1385 = smul.u32 32, %s19
        %p1386 = scmp.lt.s32.totalorder %s1385, 63
        %s1387 = scalar_select %p1386, %s1385, 63
        %s1388 = smul.addr %s1387, 8
        %s1389 = scalar_lea.vmem %s7, %s1388
      $region60: #{ff_forward.1} parent=55 // pred_fallthru
        _
    $region56: #{ff_forward.1} parent=5 // pred_fallthru
      _
  $region6: #{ff_forward.1} parent=0 // loop_footer
    %s17 = sadd.s32 1, %s13
  $region7: #{ff_forward.1} parent=0 // loop_footer_branch
    %12 = sbr.rel target = $region3
  $region8: #{ff_forward.1} parent=0 // loop_exit
    _

</llo_original>
